<compile_context>
chip_gen: v7x
topology: tpu7x:2x2x1
jax: 0.10.0
libtpu: 0.0.40
codegen_flags: <defaults>
</compile_context>

<pallas_src>
import math

import jax
import jax.numpy as jnp
import numpy as np
from jax.experimental import pallas as pl
from jax.experimental.pallas import tpu as pltpu


def get_square_indices(n):
    l = []
    start_idx = 0
    end_idx = n
    n1 = n + 1
    for i in range(n):
        l += list(range(start_idx, end_idx))
        start_idx += n1
        end_idx += n
    return l


def _round_up(a, b):
    return (a + b - 1) // b * b


def _cdiv(a, b):
    return -(-a // b)


# ---------------------------------------------------------------------------
# One-time parameter preparation (hoisted out of the per-forward hot path).
# ---------------------------------------------------------------------------
def prepare_quad_weight(weight, *, compute_dtype=jnp.bfloat16):
    """weight: (out_n, n + n*(n+1)/2) as in torch.nn.Linear(bias=False).

    Returns W_cat^T of shape ((n+1)*out_np, n) with out_np = round_up(out_n, 8):
      rows [0 : out_np)                          -> W_lin^T        (linear part)
      rows [out_np*(j+1) : out_np*(j+2)), col i  -> Wq[i, j, o]    (0 below diag)
    so that   out^T = W_lin^T @ x^T  +  sum_j x_j * (Wq[:, j, :]^T @ x^T).
    """
    out_n, n_fc_in = weight.shape
    n = int((math.isqrt(8 * n_fc_in + 9) - 3) // 2)
    assert n * (n + 3) // 2 == n_fc_in, "weight width must be n*(n+3)/2"
    out_np = _round_up(out_n, 8)                       # sublane-aligned j-blocks

    w_lin_t = weight[:, :n]                            # (out_n, n)
    w_tri = weight[:, n:]                              # (out_n, n_tri)
    ii, jj = jnp.triu_indices(n)                       # row-major == get_square_indices order
    wq = jnp.zeros((out_n, n, n), weight.dtype).at[:, ii, jj].set(w_tri)  # wq[o,i,j], lower tri = 0
    blocks = jnp.transpose(wq, (2, 0, 1))              # (n, out_n, n): blocks[j, o, i] = wq[o, i, j]

    pad_o = out_np - out_n
    if pad_o:
        w_lin_t = jnp.pad(w_lin_t, ((0, pad_o), (0, 0)))
        blocks = jnp.pad(blocks, ((0, 0), (0, pad_o), (0, 0)))

    w_cat_t = jnp.concatenate([w_lin_t[None], blocks], axis=0)   # (n+1, out_np, n)
    return w_cat_t.reshape((n + 1) * out_np, n).astype(compute_dtype)


# ---------------------------------------------------------------------------
# Kernel: chunked MXU matmuls + sublane-broadcast mul-adds, lane-dense stores.
# ---------------------------------------------------------------------------
def quad_fc_kernel(xt_ref, wt_ref, out_ref):
    xt = xt_ref[...]                                   # (n, TB) compute dtype (bf16 or f32)
    n = xt.shape[0]
    out_np = out_ref.shape[0]
    xt_f32 = xt.astype(jnp.float32)                    # VPU accumulation factors stay f32 (v5e: no bf16 VALU)

    # Linear term: (out_np, n) @ (n, TB) on the MXU, f32 accumulate.
    acc = jnp.dot(wt_ref[0:out_np, :], xt, preferred_element_type=jnp.float32)

    # Quadratic term: consume the fused-weight rows chunk-by-chunk so only `acc`
    # and one ~128-row chunk of t^T are live (no full (n+1)*out_n intermediate).
    chunk_j = max(1, 128 // out_np)
    for j0 in range(0, n, chunk_j):
        jn = min(chunk_j, n - j0)
        lo = (1 + j0) * out_np
        t = jnp.dot(wt_ref[lo:lo + jn * out_np, :], xt,
                    preferred_element_type=jnp.float32)          # (jn*out_np, TB)
        for dj in range(jn):
            j = j0 + dj
            # sublane broadcast of x^T row j  *  sublane-aligned slice of t^T
            acc = acc + xt_f32[j:j + 1, :] * t[dj * out_np:(dj + 1) * out_np, :]

    out_ref[...] = acc.astype(out_ref.dtype)           # lane-dense (TB >= 128) unmasked store


# ---------------------------------------------------------------------------
# Tile selection: lane-dense, near-full last tile, >=2 tiles for v7x megacore.
# ---------------------------------------------------------------------------
def _choose_block_b(bs):
    bs128 = _round_up(bs, 128)                         # lane-dense quantum
    slabs = bs128 // 128
    if slabs <= 1:
        return 128
    n_tiles = min(slabs, max(2, _cdiv(bs128, 1024)))   # >=2 tiles (megacore), <=1024 rows/tile
    return _round_up(_cdiv(bs128, n_tiles), 128)


# ---------------------------------------------------------------------------
# Forward wrapper: batch-tiled pallas_call; weight stays VMEM-resident.
# ---------------------------------------------------------------------------
def identical_quad_layer(x, w_cat_t, out_n, *, block_b=None):
    """x: (bs, n) ; w_cat_t: output of prepare_quad_weight ((n+1)*out_np, n)."""
    bs, n = x.shape
    rows, n_w = w_cat_t.shape
    assert n_w == n and rows % (n + 1) == 0
    out_np = rows // (n + 1)
    assert out_np % 8 == 0 and out_np >= out_n

    if block_b is None:
        block_b = _choose_block_b(bs)
    block_b = _round_up(block_b, 128)
    bs_p = _round_up(bs, block_b)

    # Batch-in-lanes layout: x^T (n, bs_p), cast to the MXU compute dtype.
    # (Wrapper-side transpose/cast is cheap layout plumbing outside the kernel.)
    xt = jnp.transpose(x).astype(w_cat_t.dtype)
    if bs_p != bs:
        xt = jnp.pad(xt, ((0, 0), (0, bs_p - bs)))

    out_t = pl.pallas_call(
        quad_fc_kernel,
        out_shape=jax.ShapeDtypeStruct((out_np, bs_p), x.dtype),
        grid=(bs_p // block_b,),
        in_specs=[
            pl.BlockSpec((n, block_b), lambda i: (0, i)),   # pipelined x^T batch tiles
            pl.BlockSpec((rows, n), lambda i: (0, 0)),      # constant block -> weight VMEM-resident
        ],
        out_specs=pl.BlockSpec((out_np, block_b), lambda i: (0, i)),  # lane-dense output slab
        compiler_params=pltpu.CompilerParams(
            dimension_semantics=("parallel",),              # megacore batch sharding on v7x
        ),
    )(xt, w_cat_t)

    # TODO(synk): bias is not supported (module default bias=False); add a fused
    #             bias row to W_cat^T if a biased variant is ever needed.
    return jnp.transpose(out_t[:out_n, :bs])


# ---------------------------------------------------------------------------
# Pure-JAX reference (port of the PyTorch forward) for verification.
# ---------------------------------------------------------------------------
def reference(x, weight):
    bs, n = x.shape
    idx = jnp.array(get_square_indices(n), dtype=jnp.int32)
    quad = (x[:, :, None] * x[:, None, :]).reshape(bs, -1)[:, idx]
    y = jnp.concatenate([x, quad], axis=-1)
    return y @ weight.T


if __name__ == "__main__":
    bs, in_n, out_n = 8, 16, 32
    n_fc_in = (in_n * (in_n + 3)) >> 1               # 152

    key = jax.random.PRNGKey(0)
    kx, kw = jax.random.split(key)
    x = jax.random.normal(kx, (bs, in_n), jnp.float32)
    bound = 1.0 / (n_fc_in ** 0.5)                   # deterministic Linear-style init
    weight = jax.random.uniform(kw, (out_n, n_fc_in), jnp.float32, -bound, bound)

    ref = reference(x, weight)

    # f32 path: tight check of the kernel math / layout.
    w_f32 = jax.block_until_ready(prepare_quad_weight(weight, compute_dtype=jnp.float32))
    out_f32 = jax.block_until_ready(identical_quad_layer(x, w_f32, out_n))
    assert out_f32.shape == (bs, out_n)
    np.testing.assert_allclose(np.asarray(out_f32), np.asarray(ref), rtol=1e-5, atol=1e-5)

    # Default bf16 MXU path: bf16 operands, f32 accumulate (looser tolerance).
    w_bf16 = jax.block_until_ready(prepare_quad_weight(weight))
    out_bf16 = jax.block_until_ready(identical_quad_layer(x, w_bf16, out_n))
    assert out_bf16.shape == (bs, out_n)
    np.testing.assert_allclose(np.asarray(out_bf16), np.asarray(ref), rtol=5e-2, atol=5e-2)

    print("KERNEL_OK")
</pallas_src>

<mosaic_0001>
module attributes {stable_mosaic.version = 11 : i64} {
  func.func @quad_fc_kernel(%arg0: i32, %arg1: memref<16x128xf32, #tpu.memory_space<vmem>>, %arg2: memref<544x16xf32, #tpu.memory_space<vmem>>, %arg3: memref<32x128xf32, #tpu.memory_space<vmem>>) attributes {dimension_semantics = [#tpu.dimension_semantics<parallel>], iteration_bounds = array<i64: 1>, scalar_prefetch = 0 : i64, scratch_operands = 0 : i64, tpu.core_type = #tpu.core_type<tc>, window_params = [{transform_indices = @transform_0, window_bounds = array<i64: 16, 128>}, {pipeline_mode = #tpu.pipeline_mode<synchronous>, transform_indices = @transform_1, window_bounds = array<i64: 544, 16>}, {transform_indices = @transform_2, window_bounds = array<i64: 32, 128>}]} {
    %c0 = arith.constant 0 : index
    %c0_0 = arith.constant 0 : index
    %0 = vector.load %arg1[%c0, %c0_0] : memref<16x128xf32, #tpu.memory_space<vmem>>, vector<16x128xf32>
    %c0_1 = arith.constant 0 : index
    %c0_2 = arith.constant 0 : index
    %1 = vector.load %arg2[%c0_1, %c0_2] : memref<544x16xf32, #tpu.memory_space<vmem>>, vector<32x16xf32>
    %cst = arith.constant dense<0.000000e+00> : vector<32x128xf32>
    %2 = tpu.matmul %1, %0, %cst {dimension_numbers = #tpu.dot_dimension_numbers<[1], [0], [0], [1], [0, 0, 1, 1], [], []>} : vector<32x16xf32>, vector<16x128xf32>, vector<32x128xf32> -> vector<32x128xf32>
    %c32 = arith.constant 32 : index
    %c0_3 = arith.constant 0 : index
    %3 = vector.load %arg2[%c32, %c0_3] : memref<544x16xf32, #tpu.memory_space<vmem>>, vector<128x16xf32>
    %cst_4 = arith.constant dense<0.000000e+00> : vector<128x128xf32>
    %4 = tpu.matmul %3, %0, %cst_4 {dimension_numbers = #tpu.dot_dimension_numbers<[1], [0], [0], [1], [0, 0, 1, 1], [], []>} : vector<128x16xf32>, vector<16x128xf32>, vector<128x128xf32> -> vector<128x128xf32>
    %5 = vector.extract_strided_slice %0 {offsets = [0, 0], sizes = [1, 128], strides = [1, 1]} : vector<16x128xf32> to vector<1x128xf32>
    %6 = vector.extract_strided_slice %4 {offsets = [0, 0], sizes = [32, 128], strides = [1, 1]} : vector<128x128xf32> to vector<32x128xf32>
    %7 = vector.broadcast %5 : vector<1x128xf32> to vector<32x128xf32>
    %8 = arith.mulf %7, %6 : vector<32x128xf32>
    %9 = arith.addf %2, %8 : vector<32x128xf32>
    %10 = vector.extract_strided_slice %0 {offsets = [1, 0], sizes = [1, 128], strides = [1, 1]} : vector<16x128xf32> to vector<1x128xf32>
    %11 = vector.extract_strided_slice %4 {offsets = [32, 0], sizes = [32, 128], strides = [1, 1]} : vector<128x128xf32> to vector<32x128xf32>
    %12 = vector.broadcast %10 : vector<1x128xf32> to vector<32x128xf32>
    %13 = arith.mulf %12, %11 : vector<32x128xf32>
    %14 = arith.addf %9, %13 : vector<32x128xf32>
    %15 = vector.extract_strided_slice %0 {offsets = [2, 0], sizes = [1, 128], strides = [1, 1]} : vector<16x128xf32> to vector<1x128xf32>
    %16 = vector.extract_strided_slice %4 {offsets = [64, 0], sizes = [32, 128], strides = [1, 1]} : vector<128x128xf32> to vector<32x128xf32>
    %17 = vector.broadcast %15 : vector<1x128xf32> to vector<32x128xf32>
    %18 = arith.mulf %17, %16 : vector<32x128xf32>
    %19 = arith.addf %14, %18 : vector<32x128xf32>
    %20 = vector.extract_strided_slice %0 {offsets = [3, 0], sizes = [1, 128], strides = [1, 1]} : vector<16x128xf32> to vector<1x128xf32>
    %21 = vector.extract_strided_slice %4 {offsets = [96, 0], sizes = [32, 128], strides = [1, 1]} : vector<128x128xf32> to vector<32x128xf32>
    %22 = vector.broadcast %20 : vector<1x128xf32> to vector<32x128xf32>
    %23 = arith.mulf %22, %21 : vector<32x128xf32>
    %24 = arith.addf %19, %23 : vector<32x128xf32>
    %c160 = arith.constant 160 : index
    %c0_5 = arith.constant 0 : index
    %25 = vector.load %arg2[%c160, %c0_5] : memref<544x16xf32, #tpu.memory_space<vmem>>, vector<128x16xf32>
    %cst_6 = arith.constant dense<0.000000e+00> : vector<128x128xf32>
    %26 = tpu.matmul %25, %0, %cst_6 {dimension_numbers = #tpu.dot_dimension_numbers<[1], [0], [0], [1], [0, 0, 1, 1], [], []>} : vector<128x16xf32>, vector<16x128xf32>, vector<128x128xf32> -> vector<128x128xf32>
    %27 = vector.extract_strided_slice %0 {offsets = [4, 0], sizes = [1, 128], strides = [1, 1]} : vector<16x128xf32> to vector<1x128xf32>
    %28 = vector.extract_strided_slice %26 {offsets = [0, 0], sizes = [32, 128], strides = [1, 1]} : vector<128x128xf32> to vector<32x128xf32>
    %29 = vector.broadcast %27 : vector<1x128xf32> to vector<32x128xf32>
    %30 = arith.mulf %29, %28 : vector<32x128xf32>
    %31 = arith.addf %24, %30 : vector<32x128xf32>
    %32 = vector.extract_strided_slice %0 {offsets = [5, 0], sizes = [1, 128], strides = [1, 1]} : vector<16x128xf32> to vector<1x128xf32>
    %33 = vector.extract_strided_slice %26 {offsets = [32, 0], sizes = [32, 128], strides = [1, 1]} : vector<128x128xf32> to vector<32x128xf32>
    %34 = vector.broadcast %32 : vector<1x128xf32> to vector<32x128xf32>
    %35 = arith.mulf %34, %33 : vector<32x128xf32>
    %36 = arith.addf %31, %35 : vector<32x128xf32>
    %37 = vector.extract_strided_slice %0 {offsets = [6, 0], sizes = [1, 128], strides = [1, 1]} : vector<16x128xf32> to vector<1x128xf32>
    %38 = vector.extract_strided_slice %26 {offsets = [64, 0], sizes = [32, 128], strides = [1, 1]} : vector<128x128xf32> to vector<32x128xf32>
    %39 = vector.broadcast %37 : vector<1x128xf32> to vector<32x128xf32>
    %40 = arith.mulf %39, %38 : vector<32x128xf32>
    %41 = arith.addf %36, %40 : vector<32x128xf32>
    %42 = vector.extract_strided_slice %0 {offsets = [7, 0], sizes = [1, 128], strides = [1, 1]} : vector<16x128xf32> to vector<1x128xf32>
    %43 = vector.extract_strided_slice %26 {offsets = [96, 0], sizes = [32, 128], strides = [1, 1]} : vector<128x128xf32> to vector<32x128xf32>
    %44 = vector.broadcast %42 : vector<1x128xf32> to vector<32x128xf32>
    %45 = arith.mulf %44, %43 : vector<32x128xf32>
    %46 = arith.addf %41, %45 : vector<32x128xf32>
    %c288 = arith.constant 288 : index
    %c0_7 = arith.constant 0 : index
    %47 = vector.load %arg2[%c288, %c0_7] : memref<544x16xf32, #tpu.memory_space<vmem>>, vector<128x16xf32>
    %cst_8 = arith.constant dense<0.000000e+00> : vector<128x128xf32>
    %48 = tpu.matmul %47, %0, %cst_8 {dimension_numbers = #tpu.dot_dimension_numbers<[1], [0], [0], [1], [0, 0, 1, 1], [], []>} : vector<128x16xf32>, vector<16x128xf32>, vector<128x128xf32> -> vector<128x128xf32>
    %49 = vector.extract_strided_slice %0 {offsets = [8, 0], sizes = [1, 128], strides = [1, 1]} : vector<16x128xf32> to vector<1x128xf32>
    %50 = vector.extract_strided_slice %48 {offsets = [0, 0], sizes = [32, 128], strides = [1, 1]} : vector<128x128xf32> to vector<32x128xf32>
    %51 = vector.broadcast %49 : vector<1x128xf32> to vector<32x128xf32>
    %52 = arith.mulf %51, %50 : vector<32x128xf32>
    %53 = arith.addf %46, %52 : vector<32x128xf32>
    %54 = vector.extract_strided_slice %0 {offsets = [9, 0], sizes = [1, 128], strides = [1, 1]} : vector<16x128xf32> to vector<1x128xf32>
    %55 = vector.extract_strided_slice %48 {offsets = [32, 0], sizes = [32, 128], strides = [1, 1]} : vector<128x128xf32> to vector<32x128xf32>
    %56 = vector.broadcast %54 : vector<1x128xf32> to vector<32x128xf32>
    %57 = arith.mulf %56, %55 : vector<32x128xf32>
    %58 = arith.addf %53, %57 : vector<32x128xf32>
    %59 = vector.extract_strided_slice %0 {offsets = [10, 0], sizes = [1, 128], strides = [1, 1]} : vector<16x128xf32> to vector<1x128xf32>
    %60 = vector.extract_strided_slice %48 {offsets = [64, 0], sizes = [32, 128], strides = [1, 1]} : vector<128x128xf32> to vector<32x128xf32>
    %61 = vector.broadcast %59 : vector<1x128xf32> to vector<32x128xf32>
    %62 = arith.mulf %61, %60 : vector<32x128xf32>
    %63 = arith.addf %58, %62 : vector<32x128xf32>
    %64 = vector.extract_strided_slice %0 {offsets = [11, 0], sizes = [1, 128], strides = [1, 1]} : vector<16x128xf32> to vector<1x128xf32>
    %65 = vector.extract_strided_slice %48 {offsets = [96, 0], sizes = [32, 128], strides = [1, 1]} : vector<128x128xf32> to vector<32x128xf32>
    %66 = vector.broadcast %64 : vector<1x128xf32> to vector<32x128xf32>
    %67 = arith.mulf %66, %65 : vector<32x128xf32>
    %68 = arith.addf %63, %67 : vector<32x128xf32>
    %c416 = arith.constant 416 : index
    %c0_9 = arith.constant 0 : index
    %69 = vector.load %arg2[%c416, %c0_9] : memref<544x16xf32, #tpu.memory_space<vmem>>, vector<128x16xf32>
    %cst_10 = arith.constant dense<0.000000e+00> : vector<128x128xf32>
    %70 = tpu.matmul %69, %0, %cst_10 {dimension_numbers = #tpu.dot_dimension_numbers<[1], [0], [0], [1], [0, 0, 1, 1], [], []>} : vector<128x16xf32>, vector<16x128xf32>, vector<128x128xf32> -> vector<128x128xf32>
    %71 = vector.extract_strided_slice %0 {offsets = [12, 0], sizes = [1, 128], strides = [1, 1]} : vector<16x128xf32> to vector<1x128xf32>
    %72 = vector.extract_strided_slice %70 {offsets = [0, 0], sizes = [32, 128], strides = [1, 1]} : vector<128x128xf32> to vector<32x128xf32>
    %73 = vector.broadcast %71 : vector<1x128xf32> to vector<32x128xf32>
    %74 = arith.mulf %73, %72 : vector<32x128xf32>
    %75 = arith.addf %68, %74 : vector<32x128xf32>
    %76 = vector.extract_strided_slice %0 {offsets = [13, 0], sizes = [1, 128], strides = [1, 1]} : vector<16x128xf32> to vector<1x128xf32>
    %77 = vector.extract_strided_slice %70 {offsets = [32, 0], sizes = [32, 128], strides = [1, 1]} : vector<128x128xf32> to vector<32x128xf32>
    %78 = vector.broadcast %76 : vector<1x128xf32> to vector<32x128xf32>
    %79 = arith.mulf %78, %77 : vector<32x128xf32>
    %80 = arith.addf %75, %79 : vector<32x128xf32>
    %81 = vector.extract_strided_slice %0 {offsets = [14, 0], sizes = [1, 128], strides = [1, 1]} : vector<16x128xf32> to vector<1x128xf32>
    %82 = vector.extract_strided_slice %70 {offsets = [64, 0], sizes = [32, 128], strides = [1, 1]} : vector<128x128xf32> to vector<32x128xf32>
    %83 = vector.broadcast %81 : vector<1x128xf32> to vector<32x128xf32>
    %84 = arith.mulf %83, %82 : vector<32x128xf32>
    %85 = arith.addf %80, %84 : vector<32x128xf32>
    %86 = vector.extract_strided_slice %0 {offsets = [15, 0], sizes = [1, 128], strides = [1, 1]} : vector<16x128xf32> to vector<1x128xf32>
    %87 = vector.extract_strided_slice %70 {offsets = [96, 0], sizes = [32, 128], strides = [1, 1]} : vector<128x128xf32> to vector<32x128xf32>
    %88 = vector.broadcast %86 : vector<1x128xf32> to vector<32x128xf32>
    %89 = arith.mulf %88, %87 : vector<32x128xf32>
    %90 = arith.addf %85, %89 : vector<32x128xf32>
    %c0_11 = arith.constant 0 : index
    %c0_12 = arith.constant 0 : index
    %91 = vector.load %arg3[%c0_11, %c0_12] : memref<32x128xf32, #tpu.memory_space<vmem>>, vector<32x128xf32>
    tpu.vector_store %arg3[%c0_11, %c0_12], %90 {strides = array<i32>} : memref<32x128xf32, #tpu.memory_space<vmem>>, vector<32x128xf32>,
    return
  }
  func.func @transform_0(%arg0: i32) -> (i32, i32) {
    %c0_i32 = arith.constant 0 : i32
    %c0_i32_0 = arith.constant 0 : i32
    return %c0_i32, %arg0 : i32, i32
  }
  func.func @transform_1(%arg0: i32) -> (i32, i32) {
    %c0_i32 = arith.constant 0 : i32
    %c0_i32_0 = arith.constant 0 : i32
    %c0_i32_1 = arith.constant 0 : i32
    return %c0_i32, %c0_i32_0 : i32, i32
  }
  func.func @transform_2(%arg0: i32) -> (i32, i32) {
    %c0_i32 = arith.constant 0 : i32
    %c0_i32_0 = arith.constant 0 : i32
    return %c0_i32, %arg0 : i32, i32
  }
}

</mosaic_0001>

<llo_original>
// kernel: tpu_custom_call.1
$region0: #{tpu_custom_call.1}
  #allocation0 [shape = 'u32[]', space=smem, size = 0x4, offset = 0x4, fixed_abs, tag = 'smem constant byte address 0x4 - core index']
  #allocation1 [shape = 'u32[144,128]{1,0:T(1,128)}', space=vmem, size = 0x12000, scoped, tag = 'internal scratch']
  %s0 = inlined_call_operand.vmem [shape: f32[16,128], index: 0, kind: input, shape index: {}]
  %s1 = inlined_call_operand.vmem [shape: f32[544,16], index: 1, kind: input, shape index: {}]
  %s2 = inlined_call_operand.hbm [shape: f32[32,128], index: 2, kind: output, shape index: {}]
  %s3 = sld [smem:[#allocation0]]
  $region18: #{tpu_custom_call.1} parent=0
    _
  %s5 = ssub.s32 1, %s3
  %s6 = scalar_select 0, %s5, %s3
  $region1: #{tpu_custom_call.1} parent=0
    #allocation2 [shape = 'u8[16384]{0}', space=vmem, size = 0x4000, scoped, tag = 'output window, operand 0, single buffered']
    #allocation3 [shape = 's32[1]{0}', space=sflag, size = 0x4, scoped, tag = 'scoped memory for tpu_custom_call.1']
    %7 = vsyncpa [#allocation3], 0
    // Predicated region
    $region2: #{tpu_custom_call.1} parent=1 // pred_check
      _
    $region3: #{tpu_custom_call.1} parent=1 // pred_check_branch
      %9 = sbr.rel (0) target = $region5
    $region4: #{tpu_custom_call.1} parent=1 // pred_region
      _
    $region5: #{tpu_custom_call.1} parent=1 // pred_fallthru
      _
    // Predicated region
    $region6: #{tpu_custom_call.1} parent=1 // pred_check
      _
    $region7: #{tpu_custom_call.1} parent=1 // pred_check_branch
      %11 = sbr.rel (0) target = $region9
    $region8: #{tpu_custom_call.1} parent=1 // pred_region
      _
    $region9: #{tpu_custom_call.1} parent=1 // pred_fallthru
      _
    %v12 = vld [vmem:[%s0] sm:$0xff]
    %v13 = vld [vmem:[%s0 + $0x8] sm:$0xff]
    %v14 = vld [vmem:[%s1] sm:$0xff]
    %v15 = vld [vmem:[%s1 + $0x8] sm:$0xff]
    %v16 = vld [vmem:[%s1 + $0x10] sm:$0xff]
    %v17 = vld [vmem:[%s1 + $0x18] sm:$0xff]
    %v18 = vld [vmem:[%s1 + $0x20] sm:$0xff]
    %v19 = vld [vmem:[%s1 + $0x28] sm:$0xff]
    %v20 = vld [vmem:[%s1 + $0x30] sm:$0xff]
    %v21 = vld [vmem:[%s1 + $0x38] sm:$0xff]
    %v22 = vld [vmem:[%s1 + $0x40] sm:$0xff]
    %v23 = vld [vmem:[%s1 + $0x48] sm:$0xff]
    %v24 = vld [vmem:[%s1 + $0x50] sm:$0xff]
    %v25 = vld [vmem:[%s1 + $0x58] sm:$0xff]
    %v26 = vld [vmem:[%s1 + $0x60] sm:$0xff]
    %v27 = vld [vmem:[%s1 + $0x68] sm:$0xff]
    %v28 = vld [vmem:[%s1 + $0x70] sm:$0xff]
    %v29 = vld [vmem:[%s1 + $0x78] sm:$0xff]
    %v30 = vld [vmem:[%s1 + $0x80] sm:$0xff]
    %v31 = vld [vmem:[%s1 + $0x88] sm:$0xff]
    %v32 = vld [vmem:[%s1 + $0x90] sm:$0xff]
    %v33 = vld [vmem:[%s1 + $0x98] sm:$0xff]
    %vm34 = vcmask 130048
    %v36 = vsel %vm34, %v18, 0
    %v39 = vsel %vm34, %v19, 0
    %v42 = vsel %vm34, %v20, 0
    %v45 = vsel %vm34, %v21, 0
    %v48 = vsel %vm34, %v22, 0
    %v51 = vsel %vm34, %v23, 0
    %v54 = vsel %vm34, %v24, 0
    %v57 = vsel %vm34, %v25, 0
    %v60 = vsel %vm34, %v26, 0
    %v63 = vsel %vm34, %v27, 0
    %v66 = vsel %vm34, %v28, 0
    %v69 = vsel %vm34, %v29, 0
    %v72 = vsel %vm34, %v30, 0
    %v75 = vsel %vm34, %v31, 0
    %v78 = vsel %vm34, %v32, 0
    %v81 = vsel %vm34, %v33, 0
    %83 = vmatprep.subr.mxu0 0.0
    %84 = vmatpush1.msra.mxu0 %v12
    %85 = vmatprep.subr.mxu0 0.0
    %86 = vmatpush1.msra.mxu0 %v13
    %87 = vmatprep.subr.mxu0 0.0
    %88 = vmatpush1.msra.mxu0 0.0
    %89 = vmatprep.subr.mxu0 0.0
    %90 = vmatpush1.msra.mxu0 0.0
    %91 = vmatprep.subr.mxu0 0.0
    %92 = vmatpush1.msra.mxu0 0.0
    %93 = vmatprep.subr.mxu0 0.0
    %94 = vmatpush1.msra.mxu0 0.0
    %95 = vmatprep.subr.mxu0 0.0
    %96 = vmatpush1.msra.mxu0 0.0
    %97 = vmatprep.subr.mxu0 0.0
    %98 = vmatpush1.msra.mxu0 0.0
    %99 = vmatprep.subr.mxu0 0.0
    %100 = vmatpush1.msra.mxu0 0.0
    %101 = vmatprep.subr.mxu0 0.0
    %102 = vmatpush1.msra.mxu0 0.0
    %103 = vmatprep.subr.mxu0 0.0
    %104 = vmatpush1.msra.mxu0 0.0
    %105 = vmatprep.subr.mxu0 0.0
    %106 = vmatpush1.msra.mxu0 0.0
    %107 = vmatprep.subr.mxu0 0.0
    %108 = vmatpush1.msra.mxu0 0.0
    %109 = vmatprep.subr.mxu0 0.0
    %110 = vmatpush1.msra.mxu0 0.0
    %111 = vmatprep.subr.mxu0 0.0
    %112 = vmatpush1.msra.mxu0 0.0
    %113 = vmatprep.subr.mxu0 0.0
    %114 = vmatpush1.msra.mxu0 0.0
    %115 = vmatprep.subr.mxu0 0.0
    %116 = vmatpush1.msra.mxu0 0.0
    %117 = vmatprep.subr.mxu0 0.0
    %118 = vmatpush1.msra.mxu0 0.0
    %119 = vmatprep.subr.mxu0 0.0
    %120 = vmatpush1.msra.mxu0 0.0
    %121 = vmatprep.subr.mxu0 0.0
    %122 = vmatpush1.msra.mxu0 0.0
    %123 = vmatprep.subr.mxu0 0.0
    %124 = vmatpush1.msra.mxu0 0.0
    %125 = vmatprep.subr.mxu0 0.0
    %126 = vmatpush1.msra.mxu0 0.0
    %127 = vmatprep.subr.mxu0 0.0
    %128 = vmatpush1.msra.mxu0 0.0
    %129 = vmatprep.subr.mxu0 0.0
    %130 = vmatpush1.msra.mxu0 0.0
    %131 = vmatprep.subr.mxu0 0.0
    %132 = vmatpush1.msra.mxu0 0.0
    %133 = vmatprep.subr.mxu0 0.0
    %134 = vmatpush1.msra.mxu0 0.0
    %135 = vmatprep.subr.mxu0 0.0
    %136 = vmatpush1.msra.mxu0 0.0
    %137 = vmatprep.subr.mxu0 0.0
    %138 = vmatpush1.msra.mxu0 0.0
    %139 = vmatprep.subr.mxu0 0.0
    %140 = vmatpush1.msra.mxu0 0.0
    %141 = vmatprep.subr.mxu0 0.0
    %142 = vmatpush1.msra.mxu0 0.0
    %143 = vmatprep.subr.mxu0 0.0
    %144 = vmatpush1.msra.mxu0 0.0
    %145 = vmatprep.subr.mxu0 0.0
    %146 = vmatpush1.msra.mxu0 0.0
    %147 = vmatprep.mubr.f32.mxu0 0.0
    %148 = vmatmul.mubr.f32.gmra.mrb[0].mxu0 %v36
    %v149 = vpop.f32.mrb[0].mxu0
    %v150 = vadd.f32 0.0, %v149
    %v151 = vpop.f32.mrb[0].mxu0
    %152 = vmatprep.mubr.f32.mxu0 0.0
    %153 = vmatmul.mubr.f32.gmra.mrb[0].mxu0 %v39
    %v154 = vpop.f32.mrb[0].mxu0
    %v155 = vadd.f32 0.0, %v154
    %v156 = vpop.f32.mrb[0].mxu0
    %157 = vmatprep.mubr.f32.mxu0 0.0
    %158 = vmatmul.mubr.f32.gmra.mrb[0].mxu0 %v42
    %v159 = vpop.f32.mrb[0].mxu0
    %v160 = vadd.f32 0.0, %v159
    %v161 = vpop.f32.mrb[0].mxu0
    %162 = vmatprep.mubr.f32.mxu0 0.0
    %163 = vmatmul.mubr.f32.gmra.mrb[0].mxu0 %v45
    %v164 = vpop.f32.mrb[0].mxu0
    %v165 = vadd.f32 0.0, %v164
    %v166 = vpop.f32.mrb[0].mxu0
    %167 = vmatprep.mubr.f32.mxu0 0.0
    %168 = vmatmul.mubr.f32.gmra.mrb[0].mxu0 %v48
    %v169 = vpop.f32.mrb[0].mxu0
    %v170 = vadd.f32 0.0, %v169
    %v171 = vpop.f32.mrb[0].mxu0
    %172 = vmatprep.mubr.f32.mxu0 0.0
    %173 = vmatmul.mubr.f32.gmra.mrb[0].mxu0 %v51
    %v174 = vpop.f32.mrb[0].mxu0
    %v175 = vadd.f32 0.0, %v174
    %v176 = vpop.f32.mrb[0].mxu0
    %177 = vmatprep.mubr.f32.mxu0 0.0
    %178 = vmatmul.mubr.f32.gmra.mrb[0].mxu0 %v54
    %v179 = vpop.f32.mrb[0].mxu0
    %v180 = vadd.f32 0.0, %v179
    %v181 = vpop.f32.mrb[0].mxu0
    %182 = vmatprep.mubr.f32.mxu0 0.0
    %183 = vmatmul.mubr.f32.gmra.mrb[0].mxu0 %v57
    %v184 = vpop.f32.mrb[0].mxu0
    %v185 = vadd.f32 0.0, %v184
    %v186 = vpop.f32.mrb[0].mxu0
    %187 = vmatprep.mubr.f32.mxu0 0.0
    %188 = vmatmul.mubr.f32.gmra.mrb[0].mxu0 %v60
    %v189 = vpop.f32.mrb[0].mxu0
    %v190 = vadd.f32 0.0, %v189
    %v191 = vpop.f32.mrb[0].mxu0
    %192 = vmatprep.mubr.f32.mxu0 0.0
    %193 = vmatmul.mubr.f32.gmra.mrb[0].mxu0 %v63
    %v194 = vpop.f32.mrb[0].mxu0
    %v195 = vadd.f32 0.0, %v194
    %v196 = vpop.f32.mrb[0].mxu0
    %197 = vmatprep.mubr.f32.mxu0 0.0
    %198 = vmatmul.mubr.f32.gmra.mrb[0].mxu0 %v66
    %v199 = vpop.f32.mrb[0].mxu0
    %v200 = vadd.f32 0.0, %v199
    %v201 = vpop.f32.mrb[0].mxu0
    %202 = vmatprep.mubr.f32.mxu0 0.0
    %203 = vmatmul.mubr.f32.gmra.mrb[0].mxu0 %v69
    %v204 = vpop.f32.mrb[0].mxu0
    %v205 = vadd.f32 0.0, %v204
    %v206 = vpop.f32.mrb[0].mxu0
    %207 = vmatprep.mubr.f32.mxu0 0.0
    %208 = vmatmul.mubr.f32.gmra.mrb[0].mxu0 %v72
    %v209 = vpop.f32.mrb[0].mxu0
    %v210 = vadd.f32 0.0, %v209
    %v211 = vpop.f32.mrb[0].mxu0
    %212 = vmatprep.mubr.f32.mxu0 0.0
    %213 = vmatmul.mubr.f32.gmra.mrb[0].mxu0 %v75
    %v214 = vpop.f32.mrb[0].mxu0
    %v215 = vadd.f32 0.0, %v214
    %v216 = vpop.f32.mrb[0].mxu0
    %217 = vmatprep.mubr.f32.mxu0 0.0
    %218 = vmatmul.mubr.f32.gmra.mrb[0].mxu0 %v78
    %v219 = vpop.f32.mrb[0].mxu0
    %v220 = vadd.f32 0.0, %v219
    %v221 = vpop.f32.mrb[0].mxu0
    %222 = vmatprep.mubr.f32.mxu0 0.0
    %223 = vmatmul.mubr.f32.gmra.mrb[0].mxu0 %v81
    %v224 = vpop.f32.mrb[0].mxu0
    %v225 = vadd.f32 0.0, %v224
    %v226 = vpop.f32.mrb[0].mxu0
    %227 = vdwg.mxu0
    %v228 = vlaneseq
    %v229 = vshrl.u32 %v228, 7
    %v230 = vsub.s32 0, %v229
    %v231 = vrot.slane %v12, %v230
    %v232 = vmul.f32 %v231, %v150
    %v233 = vmul.f32 %v231, %v155
    %v234 = vmul.f32 %v231, %v160
    %v235 = vmul.f32 %v231, %v165
    %v237 = vsel %vm34, %v14, 0
    %v240 = vsel %vm34, %v15, 0
    %v243 = vsel %vm34, %v16, 0
    %v246 = vsel %vm34, %v17, 0
    %248 = vmatprep.subr.mxu0 0.0
    %249 = vmatpush1.msra.mxu0 %v12
    %250 = vmatprep.subr.mxu0 0.0
    %251 = vmatpush1.msra.mxu0 %v13
    %252 = vmatprep.subr.mxu0 0.0
    %253 = vmatpush1.msra.mxu0 0.0
    %254 = vmatprep.subr.mxu0 0.0
    %255 = vmatpush1.msra.mxu0 0.0
    %256 = vmatprep.subr.mxu0 0.0
    %257 = vmatpush1.msra.mxu0 0.0
    %258 = vmatprep.subr.mxu0 0.0
    %259 = vmatpush1.msra.mxu0 0.0
    %260 = vmatprep.subr.mxu0 0.0
    %261 = vmatpush1.msra.mxu0 0.0
    %262 = vmatprep.subr.mxu0 0.0
    %263 = vmatpush1.msra.mxu0 0.0
    %264 = vmatprep.subr.mxu0 0.0
    %265 = vmatpush1.msra.mxu0 0.0
    %266 = vmatprep.subr.mxu0 0.0
    %267 = vmatpush1.msra.mxu0 0.0
    %268 = vmatprep.subr.mxu0 0.0
    %269 = vmatpush1.msra.mxu0 0.0
    %270 = vmatprep.subr.mxu0 0.0
    %271 = vmatpush1.msra.mxu0 0.0
    %272 = vmatprep.subr.mxu0 0.0
    %273 = vmatpush1.msra.mxu0 0.0
    %274 = vmatprep.subr.mxu0 0.0
    %275 = vmatpush1.msra.mxu0 0.0
    %276 = vmatprep.subr.mxu0 0.0
    %277 = vmatpush1.msra.mxu0 0.0
    %278 = vmatprep.subr.mxu0 0.0
    %279 = vmatpush1.msra.mxu0 0.0
    %280 = vmatprep.subr.mxu0 0.0
    %281 = vmatpush1.msra.mxu0 0.0
    %282 = vmatprep.subr.mxu0 0.0
    %283 = vmatpush1.msra.mxu0 0.0
    %284 = vmatprep.subr.mxu0 0.0
    %285 = vmatpush1.msra.mxu0 0.0
    %286 = vmatprep.subr.mxu0 0.0
    %287 = vmatpush1.msra.mxu0 0.0
    %288 = vmatprep.subr.mxu0 0.0
    %289 = vmatpush1.msra.mxu0 0.0
    %290 = vmatprep.subr.mxu0 0.0
    %291 = vmatpush1.msra.mxu0 0.0
    %292 = vmatprep.subr.mxu0 0.0
    %293 = vmatpush1.msra.mxu0 0.0
    %294 = vmatprep.subr.mxu0 0.0
    %295 = vmatpush1.msra.mxu0 0.0
    %296 = vmatprep.subr.mxu0 0.0
    %297 = vmatpush1.msra.mxu0 0.0
    %298 = vmatprep.subr.mxu0 0.0
    %299 = vmatpush1.msra.mxu0 0.0
    %300 = vmatprep.subr.mxu0 0.0
    %301 = vmatpush1.msra.mxu0 0.0
    %302 = vmatprep.subr.mxu0 0.0
    %303 = vmatpush1.msra.mxu0 0.0
    %304 = vmatprep.subr.mxu0 0.0
    %305 = vmatpush1.msra.mxu0 0.0
    %306 = vmatprep.subr.mxu0 0.0
    %307 = vmatpush1.msra.mxu0 0.0
    %308 = vmatprep.subr.mxu0 0.0
    %309 = vmatpush1.msra.mxu0 0.0
    %310 = vmatprep.subr.mxu0 0.0
    %311 = vmatpush1.msra.mxu0 0.0
    %312 = vmatprep.mubr.f32.mxu0 0.0
    %313 = vmatmul.mubr.f32.gmra.mrb[0].mxu0 %v237
    %v314 = vpop.f32.mrb[0].mxu0
    %v315 = vadd.f32 %v232, %v314
    %v316 = vpop.f32.mrb[0].mxu0
    %317 = vmatprep.mubr.f32.mxu0 0.0
    %318 = vmatmul.mubr.f32.gmra.mrb[0].mxu0 %v240
    %v319 = vpop.f32.mrb[0].mxu0
    %v320 = vadd.f32 %v233, %v319
    %v321 = vpop.f32.mrb[0].mxu0
    %322 = vmatprep.mubr.f32.mxu0 0.0
    %323 = vmatmul.mubr.f32.gmra.mrb[0].mxu0 %v243
    %v324 = vpop.f32.mrb[0].mxu0
    %v325 = vadd.f32 %v234, %v324
    %v326 = vpop.f32.mrb[0].mxu0
    %327 = vmatprep.mubr.f32.mxu0 0.0
    %328 = vmatmul.mubr.f32.gmra.mrb[0].mxu0 %v246
    %v329 = vpop.f32.mrb[0].mxu0
    %v330 = vadd.f32 %v235, %v329
    %v331 = vpop.f32.mrb[0].mxu0
    %332 = vdwg.mxu0
    %v333 = vlaneseq
    %v334 = vshrl.u32 %v333, 7
    %v335 = vsub.s32 1, %v334
    %v336 = vrot.slane %v12, %v335
    %v337 = vmul.f32 %v336, %v170
    %v338 = vmul.f32 %v336, %v175
    %v339 = vmul.f32 %v336, %v180
    %v340 = vmul.f32 %v336, %v185
    %v341 = vadd.f32 %v315, %v337
    %v342 = vadd.f32 %v320, %v338
    %v343 = vadd.f32 %v325, %v339
    %v344 = vadd.f32 %v330, %v340
    %v345 = vlaneseq
    %v346 = vshrl.u32 %v345, 7
    %v347 = vsub.s32 2, %v346
    %v348 = vrot.slane %v12, %v347
    %v349 = vmul.f32 %v348, %v190
    %v350 = vmul.f32 %v348, %v195
    %v351 = vmul.f32 %v348, %v200
    %v352 = vmul.f32 %v348, %v205
    %v353 = vadd.f32 %v341, %v349
    %v354 = vadd.f32 %v342, %v350
    %v355 = vadd.f32 %v343, %v351
    %v356 = vadd.f32 %v344, %v352
    %v357 = vlaneseq
    %v358 = vshrl.u32 %v357, 7
    %v359 = vsub.s32 3, %v358
    %v360 = vrot.slane %v12, %v359
    %v361 = vmul.f32 %v360, %v210
    %v362 = vmul.f32 %v360, %v215
    %v363 = vmul.f32 %v360, %v220
    %v364 = vmul.f32 %v360, %v225
    %v365 = vadd.f32 %v353, %v361
    %v366 = vadd.f32 %v354, %v362
    %v367 = vadd.f32 %v355, %v363
    %v368 = vadd.f32 %v356, %v364
    %v369 = vld [vmem:[%s1 + $0xa0] sm:$0xff]
    %v370 = vld [vmem:[%s1 + $0xa8] sm:$0xff]
    %v371 = vld [vmem:[%s1 + $0xb0] sm:$0xff]
    %v372 = vld [vmem:[%s1 + $0xb8] sm:$0xff]
    %v373 = vld [vmem:[%s1 + $0xc0] sm:$0xff]
    %v374 = vld [vmem:[%s1 + $0xc8] sm:$0xff]
    %v375 = vld [vmem:[%s1 + $0xd0] sm:$0xff]
    %v376 = vld [vmem:[%s1 + $0xd8] sm:$0xff]
    %v377 = vld [vmem:[%s1 + $0xe0] sm:$0xff]
    %v378 = vld [vmem:[%s1 + $0xe8] sm:$0xff]
    %v379 = vld [vmem:[%s1 + $0xf0] sm:$0xff]
    %v380 = vld [vmem:[%s1 + $0xf8] sm:$0xff]
    %v381 = vld [vmem:[%s1 + $0x100] sm:$0xff]
    %v382 = vld [vmem:[%s1 + $0x108] sm:$0xff]
    %v383 = vld [vmem:[%s1 + $0x110] sm:$0xff]
    %v384 = vld [vmem:[%s1 + $0x118] sm:$0xff]
    %v386 = vsel %vm34, %v369, 0
    %v389 = vsel %vm34, %v370, 0
    %v392 = vsel %vm34, %v371, 0
    %v395 = vsel %vm34, %v372, 0
    %v398 = vsel %vm34, %v373, 0
    %v401 = vsel %vm34, %v374, 0
    %v404 = vsel %vm34, %v375, 0
    %v407 = vsel %vm34, %v376, 0
    %v410 = vsel %vm34, %v377, 0
    %v413 = vsel %vm34, %v378, 0
    %v416 = vsel %vm34, %v379, 0
    %v419 = vsel %vm34, %v380, 0
    %v422 = vsel %vm34, %v381, 0
    %v425 = vsel %vm34, %v382, 0
    %v428 = vsel %vm34, %v383, 0
    %v431 = vsel %vm34, %v384, 0
    %433 = vmatprep.subr.mxu0 0.0
    %434 = vmatpush1.msra.mxu0 %v12
    %435 = vmatprep.subr.mxu0 0.0
    %436 = vmatpush1.msra.mxu0 %v13
    %437 = vmatprep.subr.mxu0 0.0
    %438 = vmatpush1.msra.mxu0 0.0
    %439 = vmatprep.subr.mxu0 0.0
    %440 = vmatpush1.msra.mxu0 0.0
    %441 = vmatprep.subr.mxu0 0.0
    %442 = vmatpush1.msra.mxu0 0.0
    %443 = vmatprep.subr.mxu0 0.0
    %444 = vmatpush1.msra.mxu0 0.0
    %445 = vmatprep.subr.mxu0 0.0
    %446 = vmatpush1.msra.mxu0 0.0
    %447 = vmatprep.subr.mxu0 0.0
    %448 = vmatpush1.msra.mxu0 0.0
    %449 = vmatprep.subr.mxu0 0.0
    %450 = vmatpush1.msra.mxu0 0.0
    %451 = vmatprep.subr.mxu0 0.0
    %452 = vmatpush1.msra.mxu0 0.0
    %453 = vmatprep.subr.mxu0 0.0
    %454 = vmatpush1.msra.mxu0 0.0
    %455 = vmatprep.subr.mxu0 0.0
    %456 = vmatpush1.msra.mxu0 0.0
    %457 = vmatprep.subr.mxu0 0.0
    %458 = vmatpush1.msra.mxu0 0.0
    %459 = vmatprep.subr.mxu0 0.0
    %460 = vmatpush1.msra.mxu0 0.0
    %461 = vmatprep.subr.mxu0 0.0
    %462 = vmatpush1.msra.mxu0 0.0
    %463 = vmatprep.subr.mxu0 0.0
    %464 = vmatpush1.msra.mxu0 0.0
    %465 = vmatprep.subr.mxu0 0.0
    %466 = vmatpush1.msra.mxu0 0.0
    %467 = vmatprep.subr.mxu0 0.0
    %468 = vmatpush1.msra.mxu0 0.0
    %469 = vmatprep.subr.mxu0 0.0
    %470 = vmatpush1.msra.mxu0 0.0
    %471 = vmatprep.subr.mxu0 0.0
    %472 = vmatpush1.msra.mxu0 0.0
    %473 = vmatprep.subr.mxu0 0.0
    %474 = vmatpush1.msra.mxu0 0.0
    %475 = vmatprep.subr.mxu0 0.0
    %476 = vmatpush1.msra.mxu0 0.0
    %477 = vmatprep.subr.mxu0 0.0
    %478 = vmatpush1.msra.mxu0 0.0
    %479 = vmatprep.subr.mxu0 0.0
    %480 = vmatpush1.msra.mxu0 0.0
    %481 = vmatprep.subr.mxu0 0.0
    %482 = vmatpush1.msra.mxu0 0.0
    %483 = vmatprep.subr.mxu0 0.0
    %484 = vmatpush1.msra.mxu0 0.0
    %485 = vmatprep.subr.mxu0 0.0
    %486 = vmatpush1.msra.mxu0 0.0
    %487 = vmatprep.subr.mxu0 0.0
    %488 = vmatpush1.msra.mxu0 0.0
    %489 = vmatprep.subr.mxu0 0.0
    %490 = vmatpush1.msra.mxu0 0.0
    %491 = vmatprep.subr.mxu0 0.0
    %492 = vmatpush1.msra.mxu0 0.0
    %493 = vmatprep.subr.mxu0 0.0
    %494 = vmatpush1.msra.mxu0 0.0
    %495 = vmatprep.subr.mxu0 0.0
    %496 = vmatpush1.msra.mxu0 0.0
    %497 = vmatprep.mubr.f32.mxu0 0.0
    %498 = vmatmul.mubr.f32.gmra.mrb[0].mxu0 %v386
    %v499 = vpop.f32.mrb[0].mxu0
    %v500 = vadd.f32 0.0, %v499
    %v501 = vpop.f32.mrb[0].mxu0
    %502 = vmatprep.mubr.f32.mxu0 0.0
    %503 = vmatmul.mubr.f32.gmra.mrb[0].mxu0 %v389
    %v504 = vpop.f32.mrb[0].mxu0
    %v505 = vadd.f32 0.0, %v504
    %v506 = vpop.f32.mrb[0].mxu0
    %507 = vmatprep.mubr.f32.mxu0 0.0
    %508 = vmatmul.mubr.f32.gmra.mrb[0].mxu0 %v392
    %v509 = vpop.f32.mrb[0].mxu0
    %v510 = vadd.f32 0.0, %v509
    %v511 = vpop.f32.mrb[0].mxu0
    %512 = vmatprep.mubr.f32.mxu0 0.0
    %513 = vmatmul.mubr.f32.gmra.mrb[0].mxu0 %v395
    %v514 = vpop.f32.mrb[0].mxu0
    %v515 = vadd.f32 0.0, %v514
    %v516 = vpop.f32.mrb[0].mxu0
    %517 = vmatprep.mubr.f32.mxu0 0.0
    %518 = vmatmul.mubr.f32.gmra.mrb[0].mxu0 %v398
    %v519 = vpop.f32.mrb[0].mxu0
    %v520 = vadd.f32 0.0, %v519
    %v521 = vpop.f32.mrb[0].mxu0
    %522 = vmatprep.mubr.f32.mxu0 0.0
    %523 = vmatmul.mubr.f32.gmra.mrb[0].mxu0 %v401
    %v524 = vpop.f32.mrb[0].mxu0
    %v525 = vadd.f32 0.0, %v524
    %v526 = vpop.f32.mrb[0].mxu0
    %527 = vmatprep.mubr.f32.mxu0 0.0
    %528 = vmatmul.mubr.f32.gmra.mrb[0].mxu0 %v404
    %v529 = vpop.f32.mrb[0].mxu0
    %v530 = vadd.f32 0.0, %v529
    %v531 = vpop.f32.mrb[0].mxu0
    %532 = vmatprep.mubr.f32.mxu0 0.0
    %533 = vmatmul.mubr.f32.gmra.mrb[0].mxu0 %v407
    %v534 = vpop.f32.mrb[0].mxu0
    %v535 = vadd.f32 0.0, %v534
    %v536 = vpop.f32.mrb[0].mxu0
    %537 = vmatprep.mubr.f32.mxu0 0.0
    %538 = vmatmul.mubr.f32.gmra.mrb[0].mxu0 %v410
    %v539 = vpop.f32.mrb[0].mxu0
    %v540 = vadd.f32 0.0, %v539
    %v541 = vpop.f32.mrb[0].mxu0
    %542 = vmatprep.mubr.f32.mxu0 0.0
    %543 = vmatmul.mubr.f32.gmra.mrb[0].mxu0 %v413
    %v544 = vpop.f32.mrb[0].mxu0
    %v545 = vadd.f32 0.0, %v544
    %v546 = vpop.f32.mrb[0].mxu0
    %547 = vmatprep.mubr.f32.mxu0 0.0
    %548 = vmatmul.mubr.f32.gmra.mrb[0].mxu0 %v416
    %v549 = vpop.f32.mrb[0].mxu0
    %v550 = vadd.f32 0.0, %v549
    %v551 = vpop.f32.mrb[0].mxu0
    %552 = vmatprep.mubr.f32.mxu0 0.0
    %553 = vmatmul.mubr.f32.gmra.mrb[0].mxu0 %v419
    %v554 = vpop.f32.mrb[0].mxu0
    %v555 = vadd.f32 0.0, %v554
    %v556 = vpop.f32.mrb[0].mxu0
    %557 = vmatprep.mubr.f32.mxu0 0.0
    %558 = vmatmul.mubr.f32.gmra.mrb[0].mxu0 %v422
    %v559 = vpop.f32.mrb[0].mxu0
    %v560 = vadd.f32 0.0, %v559
    %v561 = vpop.f32.mrb[0].mxu0
    %562 = vmatprep.mubr.f32.mxu0 0.0
    %563 = vmatmul.mubr.f32.gmra.mrb[0].mxu0 %v425
    %v564 = vpop.f32.mrb[0].mxu0
    %v565 = vadd.f32 0.0, %v564
    %v566 = vpop.f32.mrb[0].mxu0
    %567 = vmatprep.mubr.f32.mxu0 0.0
    %568 = vmatmul.mubr.f32.gmra.mrb[0].mxu0 %v428
    %v569 = vpop.f32.mrb[0].mxu0
    %v570 = vadd.f32 0.0, %v569
    %v571 = vpop.f32.mrb[0].mxu0
    %572 = vmatprep.mubr.f32.mxu0 0.0
    %573 = vmatmul.mubr.f32.gmra.mrb[0].mxu0 %v431
    %v574 = vpop.f32.mrb[0].mxu0
    %v575 = vadd.f32 0.0, %v574
    %v576 = vpop.f32.mrb[0].mxu0
    %577 = vdwg.mxu0
    %v578 = vlaneseq
    %v579 = vshrl.u32 %v578, 7
    %v580 = vsub.s32 4, %v579
    %v581 = vrot.slane %v12, %v580
    %v582 = vmul.f32 %v581, %v500
    %v583 = vmul.f32 %v581, %v505
    %v584 = vmul.f32 %v581, %v510
    %v585 = vmul.f32 %v581, %v515
    %v586 = vadd.f32 %v365, %v582
    %v587 = vadd.f32 %v366, %v583
    %v588 = vadd.f32 %v367, %v584
    %v589 = vadd.f32 %v368, %v585
    %v590 = vlaneseq
    %v591 = vshrl.u32 %v590, 7
    %v592 = vsub.s32 5, %v591
    %v593 = vrot.slane %v12, %v592
    %v594 = vmul.f32 %v593, %v520
    %v595 = vmul.f32 %v593, %v525
    %v596 = vmul.f32 %v593, %v530
    %v597 = vmul.f32 %v593, %v535
    %v598 = vadd.f32 %v586, %v594
    %v599 = vadd.f32 %v587, %v595
    %v600 = vadd.f32 %v588, %v596
    %v601 = vadd.f32 %v589, %v597
    %v602 = vlaneseq
    %v603 = vshrl.u32 %v602, 7
    %v604 = vsub.s32 6, %v603
    %v605 = vrot.slane %v12, %v604
    %v606 = vmul.f32 %v605, %v540
    %v607 = vmul.f32 %v605, %v545
    %v608 = vmul.f32 %v605, %v550
    %v609 = vmul.f32 %v605, %v555
    %v610 = vadd.f32 %v598, %v606
    %v611 = vadd.f32 %v599, %v607
    %v612 = vadd.f32 %v600, %v608
    %v613 = vadd.f32 %v601, %v609
    %v614 = vlaneseq
    %v615 = vshrl.u32 %v614, 7
    %v616 = vsub.s32 7, %v615
    %v617 = vrot.slane %v12, %v616
    %v618 = vmul.f32 %v617, %v560
    %v619 = vmul.f32 %v617, %v565
    %v620 = vmul.f32 %v617, %v570
    %v621 = vmul.f32 %v617, %v575
    %v622 = vadd.f32 %v610, %v618
    %v623 = vadd.f32 %v611, %v619
    %v624 = vadd.f32 %v612, %v620
    %v625 = vadd.f32 %v613, %v621
    %v626 = vld [vmem:[%s1 + $0x120] sm:$0xff]
    %v627 = vld [vmem:[%s1 + $0x128] sm:$0xff]
    %v628 = vld [vmem:[%s1 + $0x130] sm:$0xff]
    %v629 = vld [vmem:[%s1 + $0x138] sm:$0xff]
    %v630 = vld [vmem:[%s1 + $0x140] sm:$0xff]
    %v631 = vld [vmem:[%s1 + $0x148] sm:$0xff]
    %v632 = vld [vmem:[%s1 + $0x150] sm:$0xff]
    %v633 = vld [vmem:[%s1 + $0x158] sm:$0xff]
    %v634 = vld [vmem:[%s1 + $0x160] sm:$0xff]
    %v635 = vld [vmem:[%s1 + $0x168] sm:$0xff]
    %v636 = vld [vmem:[%s1 + $0x170] sm:$0xff]
    %v637 = vld [vmem:[%s1 + $0x178] sm:$0xff]
    %v638 = vld [vmem:[%s1 + $0x180] sm:$0xff]
    %v639 = vld [vmem:[%s1 + $0x188] sm:$0xff]
    %v640 = vld [vmem:[%s1 + $0x190] sm:$0xff]
    %v641 = vld [vmem:[%s1 + $0x198] sm:$0xff]
    %v643 = vsel %vm34, %v626, 0
    %v646 = vsel %vm34, %v627, 0
    %v649 = vsel %vm34, %v628, 0
    %v652 = vsel %vm34, %v629, 0
    %v655 = vsel %vm34, %v630, 0
    %v658 = vsel %vm34, %v631, 0
    %v661 = vsel %vm34, %v632, 0
    %v664 = vsel %vm34, %v633, 0
    %v667 = vsel %vm34, %v634, 0
    %v670 = vsel %vm34, %v635, 0
    %v673 = vsel %vm34, %v636, 0
    %v676 = vsel %vm34, %v637, 0
    %v679 = vsel %vm34, %v638, 0
    %v682 = vsel %vm34, %v639, 0
    %v685 = vsel %vm34, %v640, 0
    %v688 = vsel %vm34, %v641, 0
    %690 = vmatprep.subr.mxu0 0.0
    %691 = vmatpush1.msra.mxu0 %v12
    %692 = vmatprep.subr.mxu0 0.0
    %693 = vmatpush1.msra.mxu0 %v13
    %694 = vmatprep.subr.mxu0 0.0
    %695 = vmatpush1.msra.mxu0 0.0
    %696 = vmatprep.subr.mxu0 0.0
    %697 = vmatpush1.msra.mxu0 0.0
    %698 = vmatprep.subr.mxu0 0.0
    %699 = vmatpush1.msra.mxu0 0.0
    %700 = vmatprep.subr.mxu0 0.0
    %701 = vmatpush1.msra.mxu0 0.0
    %702 = vmatprep.subr.mxu0 0.0
    %703 = vmatpush1.msra.mxu0 0.0
    %704 = vmatprep.subr.mxu0 0.0
    %705 = vmatpush1.msra.mxu0 0.0
    %706 = vmatprep.subr.mxu0 0.0
    %707 = vmatpush1.msra.mxu0 0.0
    %708 = vmatprep.subr.mxu0 0.0
    %709 = vmatpush1.msra.mxu0 0.0
    %710 = vmatprep.subr.mxu0 0.0
    %711 = vmatpush1.msra.mxu0 0.0
    %712 = vmatprep.subr.mxu0 0.0
    %713 = vmatpush1.msra.mxu0 0.0
    %714 = vmatprep.subr.mxu0 0.0
    %715 = vmatpush1.msra.mxu0 0.0
    %716 = vmatprep.subr.mxu0 0.0
    %717 = vmatpush1.msra.mxu0 0.0
    %718 = vmatprep.subr.mxu0 0.0
    %719 = vmatpush1.msra.mxu0 0.0
    %720 = vmatprep.subr.mxu0 0.0
    %721 = vmatpush1.msra.mxu0 0.0
    %722 = vmatprep.subr.mxu0 0.0
    %723 = vmatpush1.msra.mxu0 0.0
    %724 = vmatprep.subr.mxu0 0.0
    %725 = vmatpush1.msra.mxu0 0.0
    %726 = vmatprep.subr.mxu0 0.0
    %727 = vmatpush1.msra.mxu0 0.0
    %728 = vmatprep.subr.mxu0 0.0
    %729 = vmatpush1.msra.mxu0 0.0
    %730 = vmatprep.subr.mxu0 0.0
    %731 = vmatpush1.msra.mxu0 0.0
    %732 = vmatprep.subr.mxu0 0.0
    %733 = vmatpush1.msra.mxu0 0.0
    %734 = vmatprep.subr.mxu0 0.0
    %735 = vmatpush1.msra.mxu0 0.0
    %736 = vmatprep.subr.mxu0 0.0
    %737 = vmatpush1.msra.mxu0 0.0
    %738 = vmatprep.subr.mxu0 0.0
    %739 = vmatpush1.msra.mxu0 0.0
    %740 = vmatprep.subr.mxu0 0.0
    %741 = vmatpush1.msra.mxu0 0.0
    %742 = vmatprep.subr.mxu0 0.0
    %743 = vmatpush1.msra.mxu0 0.0
    %744 = vmatprep.subr.mxu0 0.0
    %745 = vmatpush1.msra.mxu0 0.0
    %746 = vmatprep.subr.mxu0 0.0
    %747 = vmatpush1.msra.mxu0 0.0
    %748 = vmatprep.subr.mxu0 0.0
    %749 = vmatpush1.msra.mxu0 0.0
    %750 = vmatprep.subr.mxu0 0.0
    %751 = vmatpush1.msra.mxu0 0.0
    %752 = vmatprep.subr.mxu0 0.0
    %753 = vmatpush1.msra.mxu0 0.0
    %754 = vmatprep.mubr.f32.mxu0 0.0
    %755 = vmatmul.mubr.f32.gmra.mrb[0].mxu0 %v643
    %v756 = vpop.f32.mrb[0].mxu0
    %v757 = vadd.f32 0.0, %v756
    %v758 = vpop.f32.mrb[0].mxu0
    %759 = vmatprep.mubr.f32.mxu0 0.0
    %760 = vmatmul.mubr.f32.gmra.mrb[0].mxu0 %v646
    %v761 = vpop.f32.mrb[0].mxu0
    %v762 = vadd.f32 0.0, %v761
    %v763 = vpop.f32.mrb[0].mxu0
    %764 = vmatprep.mubr.f32.mxu0 0.0
    %765 = vmatmul.mubr.f32.gmra.mrb[0].mxu0 %v649
    %v766 = vpop.f32.mrb[0].mxu0
    %v767 = vadd.f32 0.0, %v766
    %v768 = vpop.f32.mrb[0].mxu0
    %769 = vmatprep.mubr.f32.mxu0 0.0
    %770 = vmatmul.mubr.f32.gmra.mrb[0].mxu0 %v652
    %v771 = vpop.f32.mrb[0].mxu0
    %v772 = vadd.f32 0.0, %v771
    %v773 = vpop.f32.mrb[0].mxu0
    %774 = vmatprep.mubr.f32.mxu0 0.0
    %775 = vmatmul.mubr.f32.gmra.mrb[0].mxu0 %v655
    %v776 = vpop.f32.mrb[0].mxu0
    %v777 = vadd.f32 0.0, %v776
    %v778 = vpop.f32.mrb[0].mxu0
    %779 = vmatprep.mubr.f32.mxu0 0.0
    %780 = vmatmul.mubr.f32.gmra.mrb[0].mxu0 %v658
    %v781 = vpop.f32.mrb[0].mxu0
    %v782 = vadd.f32 0.0, %v781
    %v783 = vpop.f32.mrb[0].mxu0
    %784 = vmatprep.mubr.f32.mxu0 0.0
    %785 = vmatmul.mubr.f32.gmra.mrb[0].mxu0 %v661
    %v786 = vpop.f32.mrb[0].mxu0
    %v787 = vadd.f32 0.0, %v786
    %v788 = vpop.f32.mrb[0].mxu0
    %789 = vmatprep.mubr.f32.mxu0 0.0
    %790 = vmatmul.mubr.f32.gmra.mrb[0].mxu0 %v664
    %v791 = vpop.f32.mrb[0].mxu0
    %v792 = vadd.f32 0.0, %v791
    %v793 = vpop.f32.mrb[0].mxu0
    %794 = vmatprep.mubr.f32.mxu0 0.0
    %795 = vmatmul.mubr.f32.gmra.mrb[0].mxu0 %v667
    %v796 = vpop.f32.mrb[0].mxu0
    %v797 = vadd.f32 0.0, %v796
    %v798 = vpop.f32.mrb[0].mxu0
    %799 = vmatprep.mubr.f32.mxu0 0.0
    %800 = vmatmul.mubr.f32.gmra.mrb[0].mxu0 %v670
    %v801 = vpop.f32.mrb[0].mxu0
    %v802 = vadd.f32 0.0, %v801
    %v803 = vpop.f32.mrb[0].mxu0
    %804 = vmatprep.mubr.f32.mxu0 0.0
    %805 = vmatmul.mubr.f32.gmra.mrb[0].mxu0 %v673
    %v806 = vpop.f32.mrb[0].mxu0
    %v807 = vadd.f32 0.0, %v806
    %v808 = vpop.f32.mrb[0].mxu0
    %809 = vmatprep.mubr.f32.mxu0 0.0
    %810 = vmatmul.mubr.f32.gmra.mrb[0].mxu0 %v676
    %v811 = vpop.f32.mrb[0].mxu0
    %v812 = vadd.f32 0.0, %v811
    %v813 = vpop.f32.mrb[0].mxu0
    %814 = vmatprep.mubr.f32.mxu0 0.0
    %815 = vmatmul.mubr.f32.gmra.mrb[0].mxu0 %v679
    %v816 = vpop.f32.mrb[0].mxu0
    %v817 = vadd.f32 0.0, %v816
    %v818 = vpop.f32.mrb[0].mxu0
    %819 = vmatprep.mubr.f32.mxu0 0.0
    %820 = vmatmul.mubr.f32.gmra.mrb[0].mxu0 %v682
    %v821 = vpop.f32.mrb[0].mxu0
    %v822 = vadd.f32 0.0, %v821
    %v823 = vpop.f32.mrb[0].mxu0
    %824 = vmatprep.mubr.f32.mxu0 0.0
    %825 = vmatmul.mubr.f32.gmra.mrb[0].mxu0 %v685
    %v826 = vpop.f32.mrb[0].mxu0
    %v827 = vadd.f32 0.0, %v826
    %v828 = vpop.f32.mrb[0].mxu0
    %829 = vmatprep.mubr.f32.mxu0 0.0
    %830 = vmatmul.mubr.f32.gmra.mrb[0].mxu0 %v688
    %v831 = vpop.f32.mrb[0].mxu0
    %v832 = vadd.f32 0.0, %v831
    %v833 = vpop.f32.mrb[0].mxu0
    %834 = vdwg.mxu0
    %v835 = vlaneseq
    %v836 = vshrl.u32 %v835, 7
    %v837 = vsub.s32 0, %v836
    %v838 = vrot.slane %v13, %v837
    %v839 = vmul.f32 %v838, %v757
    %v840 = vmul.f32 %v838, %v762
    %v841 = vmul.f32 %v838, %v767
    %v842 = vmul.f32 %v838, %v772
    %v843 = vadd.f32 %v622, %v839
    %v844 = vadd.f32 %v623, %v840
    %v845 = vadd.f32 %v624, %v841
    %v846 = vadd.f32 %v625, %v842
    %v847 = vlaneseq
    %v848 = vshrl.u32 %v847, 7
    %v849 = vsub.s32 1, %v848
    %v850 = vrot.slane %v13, %v849
    %v851 = vmul.f32 %v850, %v777
    %v852 = vmul.f32 %v850, %v782
    %v853 = vmul.f32 %v850, %v787
    %v854 = vmul.f32 %v850, %v792
    %v855 = vadd.f32 %v843, %v851
    %v856 = vadd.f32 %v844, %v852
    %v857 = vadd.f32 %v845, %v853
    %v858 = vadd.f32 %v846, %v854
    %v859 = vlaneseq
    %v860 = vshrl.u32 %v859, 7
    %v861 = vsub.s32 2, %v860
    %v862 = vrot.slane %v13, %v861
    %v863 = vmul.f32 %v862, %v797
    %v864 = vmul.f32 %v862, %v802
    %v865 = vmul.f32 %v862, %v807
    %v866 = vmul.f32 %v862, %v812
    %v867 = vadd.f32 %v855, %v863
    %v868 = vadd.f32 %v856, %v864
    %v869 = vadd.f32 %v857, %v865
    %v870 = vadd.f32 %v858, %v866
    %v871 = vlaneseq
    %v872 = vshrl.u32 %v871, 7
    %v873 = vsub.s32 3, %v872
    %v874 = vrot.slane %v13, %v873
    %v875 = vmul.f32 %v874, %v817
    %v876 = vmul.f32 %v874, %v822
    %v877 = vmul.f32 %v874, %v827
    %v878 = vmul.f32 %v874, %v832
    %v879 = vadd.f32 %v867, %v875
    %v880 = vadd.f32 %v868, %v876
    %v881 = vadd.f32 %v869, %v877
    %v882 = vadd.f32 %v870, %v878
    %v883 = vld [vmem:[%s1 + $0x1a0] sm:$0xff]
    %v884 = vld [vmem:[%s1 + $0x1a8] sm:$0xff]
    %v885 = vld [vmem:[%s1 + $0x1b0] sm:$0xff]
    %v886 = vld [vmem:[%s1 + $0x1b8] sm:$0xff]
    %v887 = vld [vmem:[%s1 + $0x1c0] sm:$0xff]
    %v888 = vld [vmem:[%s1 + $0x1c8] sm:$0xff]
    %v889 = vld [vmem:[%s1 + $0x1d0] sm:$0xff]
    %v890 = vld [vmem:[%s1 + $0x1d8] sm:$0xff]
    %v891 = vld [vmem:[%s1 + $0x1e0] sm:$0xff]
    %v892 = vld [vmem:[%s1 + $0x1e8] sm:$0xff]
    %v893 = vld [vmem:[%s1 + $0x1f0] sm:$0xff]
    %v894 = vld [vmem:[%s1 + $0x1f8] sm:$0xff]
    %v895 = vld [vmem:[%s1 + $0x200] sm:$0xff]
    %v896 = vld [vmem:[%s1 + $0x208] sm:$0xff]
    %v897 = vld [vmem:[%s1 + $0x210] sm:$0xff]
    %v898 = vld [vmem:[%s1 + $0x218] sm:$0xff]
    %v900 = vsel %vm34, %v883, 0
    %v903 = vsel %vm34, %v884, 0
    %v906 = vsel %vm34, %v885, 0
    %v909 = vsel %vm34, %v886, 0
    %v912 = vsel %vm34, %v887, 0
    %v915 = vsel %vm34, %v888, 0
    %v918 = vsel %vm34, %v889, 0
    %v921 = vsel %vm34, %v890, 0
    %v924 = vsel %vm34, %v891, 0
    %v927 = vsel %vm34, %v892, 0
    %v930 = vsel %vm34, %v893, 0
    %v933 = vsel %vm34, %v894, 0
    %v936 = vsel %vm34, %v895, 0
    %v939 = vsel %vm34, %v896, 0
    %v942 = vsel %vm34, %v897, 0
    %v945 = vsel %vm34, %v898, 0
    %947 = vmatprep.subr.mxu0 0.0
    %948 = vmatpush1.msra.mxu0 %v12
    %949 = vmatprep.subr.mxu0 0.0
    %950 = vmatpush1.msra.mxu0 %v13
    %951 = vmatprep.subr.mxu0 0.0
    %952 = vmatpush1.msra.mxu0 0.0
    %953 = vmatprep.subr.mxu0 0.0
    %954 = vmatpush1.msra.mxu0 0.0
    %955 = vmatprep.subr.mxu0 0.0
    %956 = vmatpush1.msra.mxu0 0.0
    %957 = vmatprep.subr.mxu0 0.0
    %958 = vmatpush1.msra.mxu0 0.0
    %959 = vmatprep.subr.mxu0 0.0
    %960 = vmatpush1.msra.mxu0 0.0
    %961 = vmatprep.subr.mxu0 0.0
    %962 = vmatpush1.msra.mxu0 0.0
    %963 = vmatprep.subr.mxu0 0.0
    %964 = vmatpush1.msra.mxu0 0.0
    %965 = vmatprep.subr.mxu0 0.0
    %966 = vmatpush1.msra.mxu0 0.0
    %967 = vmatprep.subr.mxu0 0.0
    %968 = vmatpush1.msra.mxu0 0.0
    %969 = vmatprep.subr.mxu0 0.0
    %970 = vmatpush1.msra.mxu0 0.0
    %971 = vmatprep.subr.mxu0 0.0
    %972 = vmatpush1.msra.mxu0 0.0
    %973 = vmatprep.subr.mxu0 0.0
    %974 = vmatpush1.msra.mxu0 0.0
    %975 = vmatprep.subr.mxu0 0.0
    %976 = vmatpush1.msra.mxu0 0.0
    %977 = vmatprep.subr.mxu0 0.0
    %978 = vmatpush1.msra.mxu0 0.0
    %979 = vmatprep.subr.mxu0 0.0
    %980 = vmatpush1.msra.mxu0 0.0
    %981 = vmatprep.subr.mxu0 0.0
    %982 = vmatpush1.msra.mxu0 0.0
    %983 = vmatprep.subr.mxu0 0.0
    %984 = vmatpush1.msra.mxu0 0.0
    %985 = vmatprep.subr.mxu0 0.0
    %986 = vmatpush1.msra.mxu0 0.0
    %987 = vmatprep.subr.mxu0 0.0
    %988 = vmatpush1.msra.mxu0 0.0
    %989 = vmatprep.subr.mxu0 0.0
    %990 = vmatpush1.msra.mxu0 0.0
    %991 = vmatprep.subr.mxu0 0.0
    %992 = vmatpush1.msra.mxu0 0.0
    %993 = vmatprep.subr.mxu0 0.0
    %994 = vmatpush1.msra.mxu0 0.0
    %995 = vmatprep.subr.mxu0 0.0
    %996 = vmatpush1.msra.mxu0 0.0
    %997 = vmatprep.subr.mxu0 0.0
    %998 = vmatpush1.msra.mxu0 0.0
    %999 = vmatprep.subr.mxu0 0.0
    %1000 = vmatpush1.msra.mxu0 0.0
    %1001 = vmatprep.subr.mxu0 0.0
    %1002 = vmatpush1.msra.mxu0 0.0
    %1003 = vmatprep.subr.mxu0 0.0
    %1004 = vmatpush1.msra.mxu0 0.0
    %1005 = vmatprep.subr.mxu0 0.0
    %1006 = vmatpush1.msra.mxu0 0.0
    %1007 = vmatprep.subr.mxu0 0.0
    %1008 = vmatpush1.msra.mxu0 0.0
    %1009 = vmatprep.subr.mxu0 0.0
    %1010 = vmatpush1.msra.mxu0 0.0
    %1011 = vmatprep.mubr.f32.mxu0 0.0
    %1012 = vmatmul.mubr.f32.gmra.mrb[0].mxu0 %v900
    %v1013 = vpop.f32.mrb[0].mxu0
    %v1014 = vadd.f32 0.0, %v1013
    %v1015 = vpop.f32.mrb[0].mxu0
    %1016 = vmatprep.mubr.f32.mxu0 0.0
    %1017 = vmatmul.mubr.f32.gmra.mrb[0].mxu0 %v903
    %v1018 = vpop.f32.mrb[0].mxu0
    %v1019 = vadd.f32 0.0, %v1018
    %v1020 = vpop.f32.mrb[0].mxu0
    %1021 = vmatprep.mubr.f32.mxu0 0.0
    %1022 = vmatmul.mubr.f32.gmra.mrb[0].mxu0 %v906
    %v1023 = vpop.f32.mrb[0].mxu0
    %v1024 = vadd.f32 0.0, %v1023
    %v1025 = vpop.f32.mrb[0].mxu0
    %1026 = vmatprep.mubr.f32.mxu0 0.0
    %1027 = vmatmul.mubr.f32.gmra.mrb[0].mxu0 %v909
    %v1028 = vpop.f32.mrb[0].mxu0
    %v1029 = vadd.f32 0.0, %v1028
    %v1030 = vpop.f32.mrb[0].mxu0
    %1031 = vmatprep.mubr.f32.mxu0 0.0
    %1032 = vmatmul.mubr.f32.gmra.mrb[0].mxu0 %v912
    %v1033 = vpop.f32.mrb[0].mxu0
    %v1034 = vadd.f32 0.0, %v1033
    %v1035 = vpop.f32.mrb[0].mxu0
    %1036 = vmatprep.mubr.f32.mxu0 0.0
    %1037 = vmatmul.mubr.f32.gmra.mrb[0].mxu0 %v915
    %v1038 = vpop.f32.mrb[0].mxu0
    %v1039 = vadd.f32 0.0, %v1038
    %v1040 = vpop.f32.mrb[0].mxu0
    %1041 = vmatprep.mubr.f32.mxu0 0.0
    %1042 = vmatmul.mubr.f32.gmra.mrb[0].mxu0 %v918
    %v1043 = vpop.f32.mrb[0].mxu0
    %v1044 = vadd.f32 0.0, %v1043
    %v1045 = vpop.f32.mrb[0].mxu0
    %1046 = vmatprep.mubr.f32.mxu0 0.0
    %1047 = vmatmul.mubr.f32.gmra.mrb[0].mxu0 %v921
    %v1048 = vpop.f32.mrb[0].mxu0
    %v1049 = vadd.f32 0.0, %v1048
    %v1050 = vpop.f32.mrb[0].mxu0
    %1051 = vmatprep.mubr.f32.mxu0 0.0
    %1052 = vmatmul.mubr.f32.gmra.mrb[0].mxu0 %v924
    %v1053 = vpop.f32.mrb[0].mxu0
    %v1054 = vadd.f32 0.0, %v1053
    %v1055 = vpop.f32.mrb[0].mxu0
    %1056 = vmatprep.mubr.f32.mxu0 0.0
    %1057 = vmatmul.mubr.f32.gmra.mrb[0].mxu0 %v927
    %v1058 = vpop.f32.mrb[0].mxu0
    %v1059 = vadd.f32 0.0, %v1058
    %v1060 = vpop.f32.mrb[0].mxu0
    %1061 = vmatprep.mubr.f32.mxu0 0.0
    %1062 = vmatmul.mubr.f32.gmra.mrb[0].mxu0 %v930
    %v1063 = vpop.f32.mrb[0].mxu0
    %v1064 = vadd.f32 0.0, %v1063
    %v1065 = vpop.f32.mrb[0].mxu0
    %1066 = vmatprep.mubr.f32.mxu0 0.0
    %1067 = vmatmul.mubr.f32.gmra.mrb[0].mxu0 %v933
    %v1068 = vpop.f32.mrb[0].mxu0
    %v1069 = vadd.f32 0.0, %v1068
    %v1070 = vpop.f32.mrb[0].mxu0
    %1071 = vmatprep.mubr.f32.mxu0 0.0
    %1072 = vmatmul.mubr.f32.gmra.mrb[0].mxu0 %v936
    %v1073 = vpop.f32.mrb[0].mxu0
    %v1074 = vadd.f32 0.0, %v1073
    %v1075 = vpop.f32.mrb[0].mxu0
    %1076 = vmatprep.mubr.f32.mxu0 0.0
    %1077 = vmatmul.mubr.f32.gmra.mrb[0].mxu0 %v939
    %v1078 = vpop.f32.mrb[0].mxu0
    %v1079 = vadd.f32 0.0, %v1078
    %v1080 = vpop.f32.mrb[0].mxu0
    %1081 = vmatprep.mubr.f32.mxu0 0.0
    %1082 = vmatmul.mubr.f32.gmra.mrb[0].mxu0 %v942
    %v1083 = vpop.f32.mrb[0].mxu0
    %v1084 = vadd.f32 0.0, %v1083
    %v1085 = vpop.f32.mrb[0].mxu0
    %1086 = vmatprep.mubr.f32.mxu0 0.0
    %1087 = vmatmul.mubr.f32.gmra.mrb[0].mxu0 %v945
    %v1088 = vpop.f32.mrb[0].mxu0
    %v1089 = vadd.f32 0.0, %v1088
    %v1090 = vpop.f32.mrb[0].mxu0
    %1091 = vdwg.mxu0
    %v1092 = vlaneseq
    %v1093 = vshrl.u32 %v1092, 7
    %v1094 = vsub.s32 4, %v1093
    %v1095 = vrot.slane %v13, %v1094
    %v1096 = vmul.f32 %v1095, %v1014
    %v1097 = vmul.f32 %v1095, %v1019
    %v1098 = vmul.f32 %v1095, %v1024
    %v1099 = vmul.f32 %v1095, %v1029
    %v1100 = vadd.f32 %v879, %v1096
    %v1101 = vadd.f32 %v880, %v1097
    %v1102 = vadd.f32 %v881, %v1098
    %v1103 = vadd.f32 %v882, %v1099
    %v1104 = vlaneseq
    %v1105 = vshrl.u32 %v1104, 7
    %v1106 = vsub.s32 5, %v1105
    %v1107 = vrot.slane %v13, %v1106
    %v1108 = vmul.f32 %v1107, %v1034
    %v1109 = vmul.f32 %v1107, %v1039
    %v1110 = vmul.f32 %v1107, %v1044
    %v1111 = vmul.f32 %v1107, %v1049
    %v1112 = vadd.f32 %v1100, %v1108
    %v1113 = vadd.f32 %v1101, %v1109
    %v1114 = vadd.f32 %v1102, %v1110
    %v1115 = vadd.f32 %v1103, %v1111
    %v1116 = vlaneseq
    %v1117 = vshrl.u32 %v1116, 7
    %v1118 = vsub.s32 6, %v1117
    %v1119 = vrot.slane %v13, %v1118
    %v1120 = vmul.f32 %v1119, %v1054
    %v1121 = vmul.f32 %v1119, %v1059
    %v1122 = vmul.f32 %v1119, %v1064
    %v1123 = vmul.f32 %v1119, %v1069
    %v1124 = vadd.f32 %v1112, %v1120
    %v1125 = vadd.f32 %v1113, %v1121
    %v1126 = vadd.f32 %v1114, %v1122
    %v1127 = vadd.f32 %v1115, %v1123
    %v1128 = vlaneseq
    %v1129 = vshrl.u32 %v1128, 7
    %v1130 = vsub.s32 7, %v1129
    %v1131 = vrot.slane %v13, %v1130
    %v1132 = vmul.f32 %v1131, %v1074
    %v1133 = vmul.f32 %v1131, %v1079
    %v1134 = vmul.f32 %v1131, %v1084
    %v1135 = vmul.f32 %v1131, %v1089
    %v1136 = vadd.f32 %v1124, %v1132
    %v1137 = vadd.f32 %v1125, %v1133
    %v1138 = vadd.f32 %v1126, %v1134
    %v1139 = vadd.f32 %v1127, %v1135
    %1140 = vst [vmem:[#allocation2] sm:$0xff] %v1136
    %1141 = vst [vmem:[#allocation2 + $0x8] sm:$0xff] %v1137
    %1142 = vst [vmem:[#allocation2 + $0x10] sm:$0xff] %v1138
    %1143 = vst [vmem:[#allocation2 + $0x18] sm:$0xff] %v1139
    // Predicated region
    $region10: #{tpu_custom_call.1} parent=1 // pred_check
      _
    $region11: #{tpu_custom_call.1} parent=1 // pred_check_branch
      %1145 = sbr.rel (0) target = $region13
    $region12: #{tpu_custom_call.1} parent=1 // pred_region
      %s1147 = ssub.s32 512, 512
      %1148 = vsyncadd [#allocation3], %s1147
      %s1149 = sshll.u32 [#allocation2], 4
      %s1150 = int_to_ptr.vmem [resolvable:$true] %s1149
      %1155 = dma.vmem_to_hbm [thread:$0]  %s1150, 512, %s2, [#allocation3], 128, 128, 8
    $region13: #{tpu_custom_call.1} parent=1 // pred_fallthru
      _
    // Predicated region
    $region14: #{tpu_custom_call.1} parent=1 // pred_check
      _
    $region15: #{tpu_custom_call.1} parent=1 // pred_check_branch
      %1157 = sbr.rel (0) target = $region17
    $region16: #{tpu_custom_call.1} parent=1 // pred_region
      %1158 = dma.done [#allocation3], 512
    $region17: #{tpu_custom_call.1} parent=1 // pred_fallthru
      _
    %1159 = vsyncpa [#allocation3], 1

</llo_original>
